<compile_context>
chip_gen: v7x
topology: tpu7x:2x2x1
jax: 0.10.0
libtpu: 0.0.40
codegen_flags: <defaults>
</compile_context>

<pallas_src>
import jax
import jax.numpy as jnp
from jax import lax
from jax.experimental import pallas as pl
from jax.experimental.pallas import tpu as pltpu


def _round_up(v, m):
    return ((v + m - 1) // m) * m


# --------------------------------------------------------------------------
# Kernel
# --------------------------------------------------------------------------
def _make_quant4_kernel(use_planes: bool):
    """Build the kernel.  `use_planes` (static) selects the unpack strategy:
    per-plane matmuls (lane-aligned, preferred for large K tiles) vs a single
    concat-of-planes matmul (small / non-1024-multiple K tiles)."""

    def kernel(x_ref, xsum_ref, qw_ref, params_ref, out_ref, acc_ref):
        # x_ref:      (tm, tk)        compute dtype (bf16 by default)
        # xsum_ref:   (tm, 1)         f32   rowsum of x over the FULL K (precomputed)
        # qw_ref:     (tk // 8, tn)   int32 block-de-interleaved nibble layout
        # params_ref: (8, tn)         f32   rows: 0=scales, 1=zeros, 2=bias, rest 0
        # out_ref:    (tm, tn)        f32
        # acc_ref:    (tm, tn)        f32 scratch (accumulates x @ q over K tiles)
        k = pl.program_id(2)
        nk = pl.num_programs(2)

        @pl.when(k == 0)
        def _init():
            acc_ref[...] = jnp.zeros_like(acc_ref)

        x = x_ref[...]                                  # (tm, tk)
        q = qw_ref[...]                                 # (tk//8, tn) int32
        kq = q.shape[0]                                 # tk // 8 (static)

        if use_planes:
            # kq is a multiple of 128 -> lane-aligned x slices; accumulate the
            # 8 per-plane partial products into a local value and write acc_ref
            # once (no 8x read-modify-write, no concatenated q_tile store stream).
            acc = acc_ref[...]
            for s in range(8):
                plane = (jnp.right_shift(q, 4 * s) & 0xF).astype(x.dtype)   # (kq, tn)
                xs = x[:, s * kq:(s + 1) * kq]                              # (tm, kq)
                acc = acc + jnp.dot(xs, plane, preferred_element_type=jnp.float32)
            acc_ref[...] = acc
        else:
            # Small-K fallback: block-de-interleaved layout makes the unpack a
            # plain sublane-contiguous concatenate (kq is a multiple of 16).
            planes = [(jnp.right_shift(q, 4 * s) & 0xF) for s in range(8)]
            q_tile = jnp.concatenate(planes, axis=0).astype(x.dtype)        # (tk, tn)
            acc_ref[...] += jnp.dot(x, q_tile, preferred_element_type=jnp.float32)

        @pl.when(k == nk - 1)
        def _epilogue():
            scales = params_ref[0:1, :]
            zeros = params_ref[1:2, :]
            bias = params_ref[2:3, :]
            # out = (x @ q) * scale - rowsum(x) * zero + bias
            out_ref[...] = (acc_ref[...] * scales
                            - xsum_ref[...] * zeros
                            + bias).astype(out_ref.dtype)

    return kernel


# --------------------------------------------------------------------------
# One-time weight preparation (= pack()-time; NOT on the forward path)
# --------------------------------------------------------------------------
def _repack_deinterleaved(qweight, rows_per_block):
    """Convert the module's packed layout into a block-de-interleaved layout.

    Module layout : nibble s of word r holds q[8*r + s].
    Kernel layout : within each block of `rows_per_block` packed rows
                    (covering 8*rows_per_block consecutive k), nibble s of
                    word i holds q[k0 + s*rows_per_block + i], so the kernel's
                    plane-s extraction is contiguous in the original k order.
    """
    r, n = qweight.shape
    assert r % rows_per_block == 0
    nibbles = [(jnp.right_shift(qweight, 4 * s) & 0xF).astype(jnp.uint32)
               for s in range(8)]
    q_full = jnp.stack(nibbles, axis=1).reshape(r * 8, n)        # original k order
    q_grp = q_full.reshape(r // rows_per_block, 8, rows_per_block, n)
    packed = jnp.zeros((r // rows_per_block, rows_per_block, n), dtype=jnp.uint32)
    for s in range(8):
        packed = packed | jnp.left_shift(q_grp[:, s], 4 * s)
    return lax.bitcast_convert_type(packed.reshape(r, n), jnp.int32)


def prepare_quant4_weights(qweight, scales, zeros, bias, infeatures, outfeatures,
                           *, tn=512, tk=2048):
    """One-time preparation of the module's buffers for the Pallas kernel.

    This is the pack()-time step: all padding / layout transforms live here so
    the forward path does no per-call weight work.  Returns a dict consumed by
    `quant4_linear`.  `zeros` is zero_point * scale, as stored by the module.
    """
    # ---- K sizing (lane axis of x) ----
    k_pad8 = _round_up(max(infeatures, 8), 8)
    if k_pad8 <= tk:
        tk_eff = _round_up(k_pad8, 128)        # single K step, unmasked loads
    else:
        tk_eff = _round_up(tk, 128)            # tiled K (default 2048 -> plane path)
    k_total = _round_up(k_pad8, tk_eff)

    # ---- N sizing: lane-dense output tiles (multiple of 128) ----
    n_pad128 = _round_up(outfeatures, 128)
    tn_eff = min(_round_up(tn, 128), n_pad128)
    # If a single N tile would cover the whole output, split it in two so the
    # "parallel" N grid axis can shard across both TensorCores (v7x megacore);
    # negligible cost on single-TC parts.
    if tn_eff >= n_pad128 and n_pad128 >= 256 and n_pad128 % 256 == 0:
        tn_eff = n_pad128 // 2
    n_total = _round_up(n_pad128, tn_eff)

    # ---- pad + repack the quantized weight ----
    r_total = k_total // 8
    qw = qweight.astype(jnp.int32)
    qw = jnp.pad(qw, ((0, r_total - qw.shape[0]), (0, n_total - qw.shape[1])))
    qw = _repack_deinterleaved(qw, tk_eff // 8)

    # ---- scales / zeros / bias stacked into one (8, N) f32 array (one DMA) ----
    def _prep_vec(v):
        v = v.reshape(1, -1).astype(jnp.float32)
        return jnp.pad(v, ((0, 0), (0, n_total - v.shape[1])))

    params = jnp.concatenate(
        [_prep_vec(scales), _prep_vec(zeros), _prep_vec(bias),
         jnp.zeros((5, n_total), jnp.float32)], axis=0)          # pad to 8 sublanes

    return {
        "qweight": qw, "params": params,
        "infeatures": infeatures, "outfeatures": outfeatures,
        "k_total": k_total, "n_total": n_total,
        "tk": tk_eff, "tn": tn_eff,
    }


# --------------------------------------------------------------------------
# Forward
# --------------------------------------------------------------------------
def quant4_linear(x, prepared, *, tm=512, mxu_dtype=jnp.bfloat16):
    """Pallas TPU implementation of Quant4Linear.forward.

    `prepared` comes from `prepare_quant4_weights` (pack-time).  bf16 MXU
    inputs by default (4-bit weights 0..15 are exact in bf16; accumulation is
    f32); pass mxu_dtype=jnp.float32 for bit-faithful f32 activations.
    """
    infeatures = prepared["infeatures"]
    outfeatures = prepared["outfeatures"]
    k_total, n_total = prepared["k_total"], prepared["n_total"]
    tk_eff, tn_eff = prepared["tk"], prepared["tn"]
    qw, params = prepared["qweight"], prepared["params"]

    out_batch_shape = x.shape[:-1] + (outfeatures,)
    x2 = x.reshape(-1, x.shape[-1]).astype(mxu_dtype)
    m = x2.shape[0]

    # ---- M sizing (large tiles for prefill, clamped for decode-sized M) ----
    tm_eff = min(_round_up(tm, 8), _round_up(m, 8))
    m_total = _round_up(m, tm_eff)

    if (m_total, k_total) != x2.shape:
        x2 = jnp.pad(x2, ((0, m_total - m), (0, k_total - x2.shape[1])))

    # rowsum(x) for the zero-point correction: computed once over the full K,
    # not recomputed per N tile inside the kernel.
    xsum = jnp.sum(x2.astype(jnp.float32), axis=1, keepdims=True)   # (m_total, 1)

    nm, nn, nk = m_total // tm_eff, n_total // tn_eff, k_total // tk_eff

    # ---- VMEM budget derived from the tile footprint and device capacity ----
    itemsize = jnp.dtype(mxu_dtype).itemsize
    footprint = (2 * tm_eff * tk_eff * itemsize            # x (double-buffered)
                 + 2 * (tk_eff // 8) * tn_eff * 4          # packed weight
                 + 2 * tm_eff * tn_eff * 4                 # output
                 + tm_eff * tn_eff * 4                     # accumulator scratch
                 + 2 * tm_eff * 4 + 2 * 8 * tn_eff * 4     # xsum + params
                 + 2 * tk_eff * tn_eff * itemsize)         # unpack temporaries
    try:
        vmem_cap = int(pltpu.get_tpu_info().vmem_capacity_bytes)
    except Exception:
        vmem_cap = 64 * 1024 * 1024                        # conservative (v7x per-TC)
    vmem_limit = int(min(0.75 * vmem_cap, max(32 * 1024 * 1024, 2 * footprint)))

    kernel = _make_quant4_kernel(use_planes=(tk_eff % 1024 == 0))

    out = pl.pallas_call(
        kernel,
        out_shape=jax.ShapeDtypeStruct((m_total, n_total), jnp.float32),
        grid_spec=pltpu.PrefetchScalarGridSpec(
            num_scalar_prefetch=0,
            grid=(nm, nn, nk),
            in_specs=[
                pl.BlockSpec((tm_eff, tk_eff), lambda i, j, k: (i, k)),
                pl.BlockSpec((tm_eff, 1), lambda i, j, k: (i, 0)),
                pl.BlockSpec((tk_eff // 8, tn_eff), lambda i, j, k: (k, j)),
                pl.BlockSpec((8, tn_eff), lambda i, j, k: (0, j)),
            ],
            out_specs=pl.BlockSpec((tm_eff, tn_eff), lambda i, j, k: (i, j)),
            scratch_shapes=[
                pltpu.VMEM((tm_eff, tn_eff), jnp.float32),   # acc for x @ q
            ],
        ),
        compiler_params=pltpu.CompilerParams(
            dimension_semantics=("parallel", "parallel", "arbitrary"),
            vmem_limit_bytes=vmem_limit,
        ),
    )(x2, xsum, qw, params)

    return out[:m, :outfeatures].reshape(out_batch_shape)


# --------------------------------------------------------------------------
# Test-only helper: replicate Quant4Linear.pack()'s bit packing.
# --------------------------------------------------------------------------
def pack_qweight(q_int, infeatures, outfeatures):
    padded_in = _round_up(infeatures, 8)
    if padded_in != infeatures:
        q_int = jnp.concatenate(
            [q_int, jnp.zeros((padded_in - infeatures, outfeatures), dtype=jnp.int32)],
            axis=0)
    q_u32 = q_int.astype(jnp.uint32) & 0xF
    packed = jnp.zeros((padded_in // 8, outfeatures), dtype=jnp.uint32)
    for s in range(8):
        packed = packed | (q_u32[s::8, :] << (4 * s))
    return lax.bitcast_convert_type(packed, jnp.int32)


if __name__ == "__main__":
    def run_case(key, batch_shape, infeatures, outfeatures, *,
                 tn=512, tk=2048, tm=512, mxu_dtype=jnp.bfloat16):
        k_x, k_q, k_s, k_z, k_b = jax.random.split(key, 5)
        # Activations quantized to multiples of 1/8 (exactly representable in
        # bf16/f32) so the correctness check is independent of the MXU input
        # rounding mode.
        x = jnp.round(jax.random.normal(
            k_x, batch_shape + (infeatures,), dtype=jnp.float32) * 8.0) / 8.0
        q_int = jax.random.randint(k_q, (infeatures, outfeatures), 0, 16, dtype=jnp.int32)
        scales = jax.random.uniform(k_s, (outfeatures, 1), minval=0.01, maxval=0.1)
        zero_pts = jax.random.randint(k_z, (outfeatures, 1), 0, 16).astype(jnp.float32)
        zeros = zero_pts * scales            # module stores zero_point * scale
        bias = jax.random.normal(k_b, (outfeatures,), dtype=jnp.float32) * 0.1

        qweight = pack_qweight(q_int, infeatures, outfeatures)

        prepared = prepare_quant4_weights(qweight, scales, zeros, bias,
                                          infeatures, outfeatures, tn=tn, tk=tk)
        out = quant4_linear(x, prepared, tm=tm, mxu_dtype=mxu_dtype)
        out = jax.block_until_ready(out)

        # Pure-JAX reference of the module semantics (full-precision matmul).
        w_deq = q_int.astype(jnp.float32) * scales.T - zeros.T            # (K, N)
        ref = jnp.matmul(x.reshape(-1, infeatures), w_deq,
                         precision=lax.Precision.HIGHEST) + bias
        ref = ref.reshape(batch_shape + (outfeatures,))

        assert out.shape == batch_shape + (outfeatures,)
        assert out.dtype == jnp.float32
        if not jnp.allclose(out, ref, atol=5e-3, rtol=5e-3):
            err = float(jnp.max(jnp.abs(out - ref)))
            raise AssertionError(
                f"Pallas Quant4Linear mismatch vs reference (max |err| = {err})")

    key = jax.random.PRNGKey(0)
    k1, k2, k3 = jax.random.split(key, 3)

    # Case 1: infeatures=20 (not divisible by 8 -> K padding), outfeatures=32
    # (< 128 -> lane padding), single tile, concat-unpack path.
    run_case(k1, (2, 8), 20, 32)

    # Case 2: exercises the K/N grid tiling + accumulator/epilogue path
    # (K padded 264->384 over 3 K-steps, N padded 200->256 over 2 N-steps).
    run_case(k2, (2, 8), 260, 200, tn=128, tk=128)

    # Case 3: default production path — bf16 MXU inputs, per-plane unpack
    # (tk multiple of 1024), multi-K accumulation, megacore N split, odd K.
    run_case(k3, (2, 4), 2052, 256)

    print("KERNEL_OK")
</pallas_src>

<mosaic_0001>
module attributes {stable_mosaic.version = 11 : i64} {
  func.func @kernel(%arg0: i32, %arg1: i32, %arg2: i32, %arg3: memref<16x128xbf16, #tpu.memory_space<vmem>>, %arg4: memref<16x1xf32, #tpu.memory_space<vmem>>, %arg5: memref<16x128xi32, #tpu.memory_space<vmem>>, %arg6: memref<8x128xf32, #tpu.memory_space<vmem>>, %arg7: memref<16x128xf32, #tpu.memory_space<vmem>>, %arg8: memref<16x128xf32, #tpu.memory_space<vmem>>) attributes {dimension_semantics = [#tpu.dimension_semantics<parallel>, #tpu.dimension_semantics<parallel>, #tpu.dimension_semantics<arbitrary>], iteration_bounds = array<i64: 1, 1, 1>, scalar_prefetch = 0 : i64, scratch_operands = 1 : i64, tpu.core_type = #tpu.core_type<tc>, window_params = [{transform_indices = @transform_0, window_bounds = array<i64: 16, 128>}, {transform_indices = @transform_1, window_bounds = array<i64: 16, 1>}, {transform_indices = @transform_2, window_bounds = array<i64: 16, 128>}, {transform_indices = @transform_3, window_bounds = array<i64: 8, 128>}, {transform_indices = @transform_4, window_bounds = array<i64: 16, 128>}]} {
    %c0_i32 = arith.constant 0 : i32
    %0 = arith.cmpi eq, %arg2, %c0_i32 : i32
    %1 = arith.extui %0 : i1 to i32
    %c0_i32_0 = arith.constant 0 : i32
    %2 = arith.cmpi ne, %1, %c0_i32_0 : i32
    scf.if %2 {
      %cst_18 = arith.constant 0.000000e+00 : f32
      %46 = vector.broadcast %cst_18 : f32 to vector<16x128xf32>
      %c0_19 = arith.constant 0 : index
      %c0_20 = arith.constant 0 : index
      %47 = vector.load %arg8[%c0_19, %c0_20] : memref<16x128xf32, #tpu.memory_space<vmem>>, vector<16x128xf32>
      tpu.vector_store %arg8[%c0_19, %c0_20], %46 {strides = array<i32>} : memref<16x128xf32, #tpu.memory_space<vmem>>, vector<16x128xf32>,
    } else {
    }
    %c0 = arith.constant 0 : index
    %c0_1 = arith.constant 0 : index
    %3 = vector.load %arg3[%c0, %c0_1] : memref<16x128xbf16, #tpu.memory_space<vmem>>, vector<16x128xbf16>
    %c0_2 = arith.constant 0 : index
    %c0_3 = arith.constant 0 : index
    %4 = vector.load %arg5[%c0_2, %c0_3] : memref<16x128xi32, #tpu.memory_space<vmem>>, vector<16x128xi32>
    %c0_i32_4 = arith.constant 0 : i32
    %5 = vector.broadcast %c0_i32_4 : i32 to vector<16x128xi32>
    %6 = arith.shrsi %4, %5 : vector<16x128xi32>
    %c15_i32 = arith.constant 15 : i32
    %7 = vector.broadcast %c15_i32 : i32 to vector<16x128xi32>
    %8 = arith.andi %6, %7 : vector<16x128xi32>
    %c4_i32 = arith.constant 4 : i32
    %9 = vector.broadcast %c4_i32 : i32 to vector<16x128xi32>
    %10 = arith.shrsi %4, %9 : vector<16x128xi32>
    %c15_i32_5 = arith.constant 15 : i32
    %11 = vector.broadcast %c15_i32_5 : i32 to vector<16x128xi32>
    %12 = arith.andi %10, %11 : vector<16x128xi32>
    %c8_i32 = arith.constant 8 : i32
    %13 = vector.broadcast %c8_i32 : i32 to vector<16x128xi32>
    %14 = arith.shrsi %4, %13 : vector<16x128xi32>
    %c15_i32_6 = arith.constant 15 : i32
    %15 = vector.broadcast %c15_i32_6 : i32 to vector<16x128xi32>
    %16 = arith.andi %14, %15 : vector<16x128xi32>
    %c12_i32 = arith.constant 12 : i32
    %17 = vector.broadcast %c12_i32 : i32 to vector<16x128xi32>
    %18 = arith.shrsi %4, %17 : vector<16x128xi32>
    %c15_i32_7 = arith.constant 15 : i32
    %19 = vector.broadcast %c15_i32_7 : i32 to vector<16x128xi32>
    %20 = arith.andi %18, %19 : vector<16x128xi32>
    %c16_i32 = arith.constant 16 : i32
    %21 = vector.broadcast %c16_i32 : i32 to vector<16x128xi32>
    %22 = arith.shrsi %4, %21 : vector<16x128xi32>
    %c15_i32_8 = arith.constant 15 : i32
    %23 = vector.broadcast %c15_i32_8 : i32 to vector<16x128xi32>
    %24 = arith.andi %22, %23 : vector<16x128xi32>
    %c20_i32 = arith.constant 20 : i32
    %25 = vector.broadcast %c20_i32 : i32 to vector<16x128xi32>
    %26 = arith.shrsi %4, %25 : vector<16x128xi32>
    %c15_i32_9 = arith.constant 15 : i32
    %27 = vector.broadcast %c15_i32_9 : i32 to vector<16x128xi32>
    %28 = arith.andi %26, %27 : vector<16x128xi32>
    %c24_i32 = arith.constant 24 : i32
    %29 = vector.broadcast %c24_i32 : i32 to vector<16x128xi32>
    %30 = arith.shrsi %4, %29 : vector<16x128xi32>
    %c15_i32_10 = arith.constant 15 : i32
    %31 = vector.broadcast %c15_i32_10 : i32 to vector<16x128xi32>
    %32 = arith.andi %30, %31 : vector<16x128xi32>
    %c28_i32 = arith.constant 28 : i32
    %33 = vector.broadcast %c28_i32 : i32 to vector<16x128xi32>
    %34 = arith.shrsi %4, %33 : vector<16x128xi32>
    %c15_i32_11 = arith.constant 15 : i32
    %35 = vector.broadcast %c15_i32_11 : i32 to vector<16x128xi32>
    %36 = arith.andi %34, %35 : vector<16x128xi32>
    %37 = tpu.concatenate %8, %12, %16, %20, %24, %28, %32, %36 in 0 : vector<16x128xi32>, vector<16x128xi32>, vector<16x128xi32>, vector<16x128xi32>, vector<16x128xi32>, vector<16x128xi32>, vector<16x128xi32>, vector<16x128xi32> -> vector<128x128xi32>
    %38 = arith.sitofp %37 : vector<128x128xi32> to vector<128x128xbf16>
    %c0_12 = arith.constant 0 : index
    %c0_13 = arith.constant 0 : index
    %39 = vector.load %arg8[%c0_12, %c0_13] : memref<16x128xf32, #tpu.memory_space<vmem>>, vector<16x128xf32>
    %cst = arith.constant dense<0.000000e+00> : vector<16x128xf32>
    %40 = tpu.matmul %3, %38, %cst {dimension_numbers = #tpu.dot_dimension_numbers<[1], [0], [0], [1], [0, 0, 1, 1], [], []>} : vector<16x128xbf16>, vector<128x128xbf16>, vector<16x128xf32> -> vector<16x128xf32>
    %41 = arith.addf %39, %40 : vector<16x128xf32>
    %c0_14 = arith.constant 0 : index
    %c0_15 = arith.constant 0 : index
    %42 = vector.load %arg8[%c0_14, %c0_15] : memref<16x128xf32, #tpu.memory_space<vmem>>, vector<16x128xf32>
    tpu.vector_store %arg8[%c0_14, %c0_15], %41 {strides = array<i32>} : memref<16x128xf32, #tpu.memory_space<vmem>>, vector<16x128xf32>,
    %c0_i32_16 = arith.constant 0 : i32
    %43 = arith.cmpi eq, %arg2, %c0_i32_16 : i32
    %44 = arith.extui %43 : i1 to i32
    %c0_i32_17 = arith.constant 0 : i32
    %45 = arith.cmpi ne, %44, %c0_i32_17 : i32
    scf.if %45 {
      %c0_18 = arith.constant 0 : index
      %c0_19 = arith.constant 0 : index
      %46 = vector.load %arg6[%c0_18, %c0_19] : memref<8x128xf32, #tpu.memory_space<vmem>>, vector<1x128xf32>
      %c1 = arith.constant 1 : index
      %c0_20 = arith.constant 0 : index
      %47 = vector.load %arg6[%c1, %c0_20] : memref<8x128xf32, #tpu.memory_space<vmem>>, vector<1x128xf32>
      %c2 = arith.constant 2 : index
      %c0_21 = arith.constant 0 : index
      %48 = vector.load %arg6[%c2, %c0_21] : memref<8x128xf32, #tpu.memory_space<vmem>>, vector<1x128xf32>
      %c0_22 = arith.constant 0 : index
      %c0_23 = arith.constant 0 : index
      %49 = vector.load %arg8[%c0_22, %c0_23] : memref<16x128xf32, #tpu.memory_space<vmem>>, vector<16x128xf32>
      %50 = vector.broadcast %46 : vector<1x128xf32> to vector<16x128xf32>
      %51 = arith.mulf %49, %50 : vector<16x128xf32>
      %c0_24 = arith.constant 0 : index
      %c0_25 = arith.constant 0 : index
      %52 = vector.load %arg4[%c0_24, %c0_25] : memref<16x1xf32, #tpu.memory_space<vmem>>, vector<16x1xf32>
      %53 = vector.broadcast %52 : vector<16x1xf32> to vector<16x128xf32>
      %54 = vector.broadcast %47 : vector<1x128xf32> to vector<16x128xf32>
      %55 = arith.mulf %53, %54 : vector<16x128xf32>
      %56 = arith.subf %51, %55 : vector<16x128xf32>
      %57 = vector.broadcast %48 : vector<1x128xf32> to vector<16x128xf32>
      %58 = arith.addf %56, %57 : vector<16x128xf32>
      %c0_26 = arith.constant 0 : index
      %c0_27 = arith.constant 0 : index
      %59 = vector.load %arg7[%c0_26, %c0_27] : memref<16x128xf32, #tpu.memory_space<vmem>>, vector<16x128xf32>
      tpu.vector_store %arg7[%c0_26, %c0_27], %58 {strides = array<i32>} : memref<16x128xf32, #tpu.memory_space<vmem>>, vector<16x128xf32>,
    } else {
    }
    return
  }
  func.func @transform_0(%arg0: i32, %arg1: i32, %arg2: i32) -> (i32, i32) {
    %c0_i32 = arith.constant 0 : i32
    return %arg0, %arg2 : i32, i32
  }
  func.func @transform_1(%arg0: i32, %arg1: i32, %arg2: i32) -> (i32, i32) {
    %c0_i32 = arith.constant 0 : i32
    %c0_i32_0 = arith.constant 0 : i32
    return %arg0, %c0_i32 : i32, i32
  }
  func.func @transform_2(%arg0: i32, %arg1: i32, %arg2: i32) -> (i32, i32) {
    %c0_i32 = arith.constant 0 : i32
    return %arg2, %arg1 : i32, i32
  }
  func.func @transform_3(%arg0: i32, %arg1: i32, %arg2: i32) -> (i32, i32) {
    %c0_i32 = arith.constant 0 : i32
    %c0_i32_0 = arith.constant 0 : i32
    return %c0_i32, %arg1 : i32, i32
  }
  func.func @transform_4(%arg0: i32, %arg1: i32, %arg2: i32) -> (i32, i32) {
    %c0_i32 = arith.constant 0 : i32
    return %arg0, %arg1 : i32, i32
  }
}

</mosaic_0001>

<llo_original>
// kernel: tpu_custom_call.1
$region0: #{tpu_custom_call.1}
  #allocation0 [shape = 'u32[]', space=smem, size = 0x4, offset = 0x4, fixed_abs, tag = 'smem constant byte address 0x4 - core index']
  #allocation1 [shape = 'u32[144,128]{1,0:T(1,128)}', space=vmem, size = 0x12000, scoped, tag = 'internal scratch']
  #allocation2 [shape = 'f32[16,128]{1,0:T(8,128)}', space=vmem, size = 0x2000, scoped, tag = 'scratch operand']
  %s0 = inlined_call_operand.vmem [shape: bf16[16,128], index: 0, kind: input, shape index: {}]
  %s1 = inlined_call_operand.vmem [shape: f32[16,1], index: 1, kind: input, shape index: {}]
  %s2 = inlined_call_operand.vmem [shape: s32[16,128], index: 2, kind: input, shape index: {}]
  %s3 = inlined_call_operand.hbm [shape: f32[8,128], index: 3, kind: input, shape index: {}]
  %s4 = inlined_call_operand.hbm [shape: f32[16,128], index: 4, kind: output, shape index: {}]
  %s5 = sld [smem:[#allocation0]]
  $region38: #{tpu_custom_call.1} parent=0
    _
  %s7 = ssub.s32 1, %s5
  %s8 = scalar_select 0, %s7, %s5
  $region1: #{tpu_custom_call.1} parent=0
    #allocation3 [shape = 'u8[4096]{0}', space=vmem, size = 0x1000, scoped, tag = 'input window, operand 3, single buffered']
    #allocation4 [shape = 's32[1]{0}', space=sflag, size = 0x4, scoped, tag = 'scoped memory for tpu_custom_call.1']
    #allocation5 [shape = 's32[1]{0}', space=sflag, size = 0x4, scoped, tag = 'scoped memory for tpu_custom_call.1']
    #allocation6 [shape = 'u8[8192]{0}', space=vmem, size = 0x2000, scoped, tag = 'output window, operand 0, single buffered']
    %9 = vsyncpa [#allocation4], 0
    %10 = vsyncpa [#allocation5], 0
    // Predicated region
    $region2: #{tpu_custom_call.1} parent=1 // pred_check
      _
    $region3: #{tpu_custom_call.1} parent=1 // pred_check_branch
      %12 = sbr.rel (0) target = $region5
    $region4: #{tpu_custom_call.1} parent=1 // pred_region
      _
    $region5: #{tpu_custom_call.1} parent=1 // pred_fallthru
      _
    // Predicated region
    $region6: #{tpu_custom_call.1} parent=1 // pred_check
      _
    $region7: #{tpu_custom_call.1} parent=1 // pred_check_branch
      %14 = sbr.rel (0) target = $region9
    $region8: #{tpu_custom_call.1} parent=1 // pred_region
      _
    $region9: #{tpu_custom_call.1} parent=1 // pred_fallthru
      _
    // Predicated region
    $region10: #{tpu_custom_call.1} parent=1 // pred_check
      _
    $region11: #{tpu_custom_call.1} parent=1 // pred_check_branch
      %16 = sbr.rel (0) target = $region13
    $region12: #{tpu_custom_call.1} parent=1 // pred_region
      _
    $region13: #{tpu_custom_call.1} parent=1 // pred_fallthru
      _
    // Predicated region
    $region14: #{tpu_custom_call.1} parent=1 // pred_check
      _
    $region15: #{tpu_custom_call.1} parent=1 // pred_check_branch
      %18 = sbr.rel (0) target = $region17
    $region16: #{tpu_custom_call.1} parent=1 // pred_region
      %s20 = ssub.s32 128, 128
      %21 = vsyncadd [#allocation4], %s20
      %s23 = sshll.u32 [#allocation3], 4
      %s24 = int_to_ptr.vmem [resolvable:$true] %s23
      %26 = dma.hbm_to_vmem [thread:$0]  %s3, 128, %s24, [#allocation4]
    $region17: #{tpu_custom_call.1} parent=1 // pred_fallthru
      _
    // Predicated region
    $region18: #{tpu_custom_call.1} parent=1 // pred_check
      _
    $region19: #{tpu_custom_call.1} parent=1 // pred_check_branch
      %28 = sbr.rel (0) target = $region21
    $region20: #{tpu_custom_call.1} parent=1 // pred_region
      %29 = dma.done [#allocation4], 128
    $region21: #{tpu_custom_call.1} parent=1 // pred_fallthru
      _
    %p31 = scmp.eq.s32.totalorder 0, 0
    // Predicated region
    $region22: #{tpu_custom_call.1} parent=1 // pred_check
      %p32 = pneg %p31
    $region23: #{tpu_custom_call.1} parent=1 // pred_check_branch
      %34 = sbr.rel (%p32) target = $region25
    $region24: #{tpu_custom_call.1} parent=1 // pred_region
      %35 = vst [vmem:[#allocation2] sm:$0xff] 0.0
      %36 = vst [vmem:[#allocation2 + $0x8] sm:$0xff] 0.0
    $region25: #{tpu_custom_call.1} parent=1 // pred_fallthru
      _
    %v37 = vld [vmem:[%s0] sm:$0xf]
    %v38 = vld [vmem:[%s0 + $0x4] sm:$0xf]
    %v39 = vld [vmem:[%s2] sm:$0xff]
    %v40 = vld [vmem:[%s2 + $0x8] sm:$0xff]
    %v41 = vand.u32 %v39, 15
    %v42 = vand.u32 %v40, 15
    %v43 = vshra.s32 %v39, 4
    %v44 = vshra.s32 %v40, 4
    %v45 = vand.u32 %v43, 15
    %v46 = vand.u32 %v44, 15
    %v47 = vshra.s32 %v39, 8
    %v48 = vshra.s32 %v40, 8
    %v49 = vand.u32 %v47, 15
    %v50 = vand.u32 %v48, 15
    %v51 = vshra.s32 %v39, 12
    %v52 = vshra.s32 %v40, 12
    %v53 = vand.u32 %v51, 15
    %v54 = vand.u32 %v52, 15
    %v55 = vshra.s32 %v39, 16
    %v56 = vshra.s32 %v40, 16
    %v57 = vand.u32 %v55, 15
    %v58 = vand.u32 %v56, 15
    %v59 = vshra.s32 %v39, 20
    %v60 = vshra.s32 %v40, 20
    %v61 = vand.u32 %v59, 15
    %v62 = vand.u32 %v60, 15
    %v63 = vshra.s32 %v39, 24
    %v64 = vshra.s32 %v40, 24
    %v65 = vand.u32 %v63, 15
    %v66 = vand.u32 %v64, 15
    %v67 = vshra.s32 %v39, 28
    %v68 = vshra.s32 %v40, 28
    %v69 = vand.u32 %v67, 15
    %v70 = vand.u32 %v68, 15
    %v71 = vcvt.s32.f32 %v41
    %v72 = vcvt.s32.f32 %v42
    %v73 = vcvt.s32.f32 %v45
    %v74 = vcvt.s32.f32 %v46
    %v75 = vcvt.s32.f32 %v49
    %v76 = vcvt.s32.f32 %v50
    %v77 = vcvt.s32.f32 %v53
    %v78 = vcvt.s32.f32 %v54
    %v79 = vcvt.s32.f32 %v57
    %v80 = vcvt.s32.f32 %v58
    %v81 = vcvt.s32.f32 %v61
    %v82 = vcvt.s32.f32 %v62
    %v83 = vcvt.s32.f32 %v65
    %v84 = vcvt.s32.f32 %v66
    %v85 = vcvt.s32.f32 %v69
    %v86 = vcvt.s32.f32 %v70
    %v87 = vpack.c.bf16 %v72, %v71
    %v88 = vpack.c.bf16 %v74, %v73
    %v89 = vpack.c.bf16 %v76, %v75
    %v90 = vpack.c.bf16 %v78, %v77
    %v91 = vpack.c.bf16 %v80, %v79
    %v92 = vpack.c.bf16 %v82, %v81
    %v93 = vpack.c.bf16 %v84, %v83
    %v94 = vpack.c.bf16 %v86, %v85
    %v95 = vld [vmem:[#allocation2] sm:$0xff]
    %v96 = vld [vmem:[#allocation2 + $0x8] sm:$0xff]
    %v99 = vunpack.c.l.b16 %v37
    %v100 = vunpack.c.l.b16 %v38
    %v101 = vpack.c.b16 %v100, %v99
    %103 = vmatprep.subr.bf16.mxu0 0
    %104 = vmatpush1.bf16.msra.mxu0 %v87
    %105 = vmatprep.subr.bf16.mxu0 0
    %106 = vmatpush1.bf16.msra.mxu0 %v88
    %107 = vmatprep.subr.bf16.mxu0 0
    %108 = vmatpush1.bf16.msra.mxu0 %v89
    %109 = vmatprep.subr.bf16.mxu0 0
    %110 = vmatpush1.bf16.msra.mxu0 %v90
    %111 = vmatprep.subr.bf16.mxu0 0
    %112 = vmatpush1.bf16.msra.mxu0 %v91
    %113 = vmatprep.subr.bf16.mxu0 0
    %114 = vmatpush1.bf16.msra.mxu0 %v92
    %115 = vmatprep.subr.bf16.mxu0 0
    %116 = vmatpush1.bf16.msra.mxu0 %v93
    %117 = vmatprep.subr.bf16.mxu0 0
    %118 = vmatpush1.bf16.msra.mxu0 %v94
    %119 = vmatprep.subr.bf16.mxu0 0
    %120 = vmatpush1.bf16.msra.mxu0 0
    %121 = vmatprep.subr.bf16.mxu0 0
    %122 = vmatpush1.bf16.msra.mxu0 0
    %123 = vmatprep.subr.bf16.mxu0 0
    %124 = vmatpush1.bf16.msra.mxu0 0
    %125 = vmatprep.subr.bf16.mxu0 0
    %126 = vmatpush1.bf16.msra.mxu0 0
    %127 = vmatprep.subr.bf16.mxu0 0
    %128 = vmatpush1.bf16.msra.mxu0 0
    %129 = vmatprep.subr.bf16.mxu0 0
    %130 = vmatpush1.bf16.msra.mxu0 0
    %131 = vmatprep.subr.bf16.mxu0 0
    %132 = vmatpush1.bf16.msra.mxu0 0
    %133 = vmatprep.subr.bf16.mxu0 0
    %134 = vmatpush1.bf16.msra.mxu0 0
    %135 = vmatprep.mubr.bf16.mxu0 0
    %136 = vmatmul.mubr.bf16.gmra.mrb[0].mxu0 %v101
    %v137 = vpop.f32.mrb[0].mxu0
    %v138 = vadd.f32 0.0, %v137
    %v139 = vpop.f32.mrb[0].mxu0
    %v140 = vpop.f32.mrb[0].mxu0
    %v141 = vadd.f32 0.0, %v140
    %v142 = vpop.f32.mrb[0].mxu0
    %143 = vdwg.mxu0
    %v144 = vadd.f32 %v95, %v138
    %v145 = vadd.f32 %v96, %v141
    %146 = vst [vmem:[#allocation2] sm:$0xff] %v144
    %147 = vst [vmem:[#allocation2 + $0x8] sm:$0xff] %v145
    // Predicated region
    $region26: #{tpu_custom_call.1} parent=1 // pred_check
      %p148 = pneg %p31
    $region27: #{tpu_custom_call.1} parent=1 // pred_check_branch
      %150 = sbr.rel (%p148) target = $region29
    $region28: #{tpu_custom_call.1} parent=1 // pred_region
      %v151 = vld [vmem:[#allocation3] sm:$0x1]
      %v152 = vld [vmem:[#allocation3 + $0x1] sm:$0x1]
      %v153 = vld [vmem:[#allocation3 + $0x2] sm:$0x1]
      %v154 = vld [vmem:[#allocation2] sm:$0xff]
      %v155 = vld [vmem:[#allocation2 + $0x8] sm:$0xff]
      %v156 = vlaneseq
      %v157 = vshrl.u32 %v156, 7
      %v158 = vsub.s32 0, %v157
      %v159 = vrot.slane %v151, %v158
      %v160 = vmul.f32 %v154, %v159
      %v161 = vmul.f32 %v155, %v159
      %v162 = vld [vmem:[%s1] sm:$0xff]
      %v163 = vld [vmem:[%s1 + $0x8] sm:$0xff]
      %165 = vset.pattern.permute.xlu0 0
      %166 = vperm.xlu0 %165, %v162
      %v167 = vpop.permute.xlu0 %166
      %170 = vset.pattern.permute.xlu0 0
      %171 = vperm.xlu0 %170, %v163
      %v172 = vpop.permute.xlu0 %171
      %v174 = vlaneseq
      %v175 = vshrl.u32 %v174, 7
      %v176 = vsub.s32 0, %v175
      %v177 = vrot.slane %v152, %v176
      %v178 = vmul.f32 %v167, %v177
      %v179 = vmul.f32 %v172, %v177
      %v180 = vsub.f32 %v160, %v178
      %v181 = vsub.f32 %v161, %v179
      %v182 = vlaneseq
      %v183 = vshrl.u32 %v182, 7
      %v184 = vsub.s32 0, %v183
      %v185 = vrot.slane %v153, %v184
      %v186 = vadd.f32 %v180, %v185
      %v187 = vadd.f32 %v181, %v185
      %188 = vst [vmem:[#allocation6] sm:$0xff] %v186
      %189 = vst [vmem:[#allocation6 + $0x8] sm:$0xff] %v187
    $region29: #{tpu_custom_call.1} parent=1 // pred_fallthru
      _
    // Predicated region
    $region30: #{tpu_custom_call.1} parent=1 // pred_check
      _
    $region31: #{tpu_custom_call.1} parent=1 // pred_check_branch
      %191 = sbr.rel (0) target = $region33
    $region32: #{tpu_custom_call.1} parent=1 // pred_region
      %s193 = ssub.s32 256, 256
      %194 = vsyncadd [#allocation5], %s193
      %s195 = sshll.u32 [#allocation6], 4
      %s196 = int_to_ptr.vmem [resolvable:$true] %s195
      %201 = dma.vmem_to_hbm [thread:$0]  %s196, 256, %s4, [#allocation5], 128, 128, 8
    $region33: #{tpu_custom_call.1} parent=1 // pred_fallthru
      _
    // Predicated region
    $region34: #{tpu_custom_call.1} parent=1 // pred_check
      _
    $region35: #{tpu_custom_call.1} parent=1 // pred_check_branch
      %203 = sbr.rel (0) target = $region37
    $region36: #{tpu_custom_call.1} parent=1 // pred_region
      %204 = dma.done [#allocation5], 256
    $region37: #{tpu_custom_call.1} parent=1 // pred_fallthru
      _
    %205 = vsyncpa [#allocation4], 1
    %206 = vsyncpa [#allocation5], 1

</llo_original>
